<compile_context>
chip_gen: v6e
topology: v6e:2x2x1
jax: 0.10.0
libtpu: 0.0.40
codegen_flags: <defaults>
</compile_context>

<pallas_src>
import jax
import jax.numpy as jnp
from jax.experimental import pallas as pl
from jax.experimental.pallas import tpu as pltpu


def _coords_kernel(x_ref, cm_ref, o_ref):
    # x_ref:  (TB, C,   THW)  input channels for TB batch elements, THW lanes
    # cm_ref: (2,  THW)       precomputed [h-map, w-map] chunk (batch-invariant)
    # o_ref:  (TB, C+2, THW)
    TB, C, THW = x_ref.shape

    # Pass-through copy of the original channels (lane-dense: THW % 128 == 0).
    o_ref[:, :C, :] = x_ref[...]

    # Coordinate channels, written row-by-row so we never materialize a
    # (TB, 2, THW) temporary that would be rebuilt every grid step.
    h_row = cm_ref[0:1, :]  # (1, THW)
    w_row = cm_ref[1:2, :]  # (1, THW)
    o_ref[:, C:C + 1, :] = jnp.broadcast_to(h_row[None, :, :], (TB, 1, THW))
    o_ref[:, C + 1:C + 2, :] = jnp.broadcast_to(w_row[None, :, :], (TB, 1, THW))


def _round_up(v, m):
    return ((v + m - 1) // m) * m


def _vmem_capacity_bytes():
    try:
        return int(pltpu.get_tpu_info().vmem_capacity_bytes)
    except Exception:
        return 64 << 20  # conservative fallback: v7x per-TensorCore VMEM


def coords(x):
    """Adds 2 channels that carry coordinate information (NCHW input)."""
    B, C, H, W = x.shape
    dtype = x.dtype
    itemsize = jnp.dtype(dtype).itemsize
    HW = H * W
    HW_pad = _round_up(HW, 128)  # lane-dense (unmasked) stores need 128-multiples

    # Batch-invariant coordinate maps, computed once at trace time.
    # linspace in f32 then cast (matches torch numerics; linspace(0,1,1) == [0]).
    hm = jnp.linspace(0.0, 1.0, H, dtype=jnp.float32).astype(dtype)  # (H,)
    wm = jnp.linspace(0.0, 1.0, W, dtype=jnp.float32).astype(dtype)  # (W,)
    cm = jnp.stack(
        [
            jnp.broadcast_to(hm[:, None], (H, W)).reshape(HW),
            jnp.broadcast_to(wm[None, :], (H, W)).reshape(HW),
        ],
        axis=0,
    )  # (2, HW)

    x2 = x.reshape(B, C, HW)  # contiguous reshape, no data movement
    if HW_pad != HW:
        pad = HW_pad - HW
        x2 = jnp.pad(x2, ((0, 0), (0, 0), (0, pad)))
        cm = jnp.pad(cm, ((0, 0), (0, pad)))

    # ---- Tile selection: cdiv-based, accounts for (sublane, 128) padding. ----
    sub = max(8, (8 * 4) // itemsize)          # f32 -> 8, bf16 -> 16, int8 -> 32
    c_in_pad = _round_up(C, sub)               # real VMEM sublanes of input tile
    c_out_pad = _round_up(C + 2, sub)          # real VMEM sublanes of output tile

    vmem_cap = _vmem_capacity_bytes()
    # Combined (in + out) bytes per block; Pallas double-buffers each side.
    block_budget = (16 << 20) if vmem_cap >= (96 << 20) else (8 << 20)

    per_sample = (c_in_pad + c_out_pad) * HW_pad * itemsize
    if per_sample <= block_budget:
        # Whole-sample blocks; pack as many batch elements as fit the budget.
        TB = max(1, min(B, block_budget // per_sample))
        THW = HW_pad
    else:
        # A single sample does not fit: tile the spatial (lane) axis too,
        # in multiples of 128 lanes, so blocks always fit VMEM even at TB=1.
        TB = 1
        per_128 = (c_in_pad + c_out_pad) * 128 * itemsize
        THW = min(HW_pad, max(128, (block_budget // per_128) * 128))

    nb = pl.cdiv(B, TB)
    nhw = pl.cdiv(HW_pad, THW)

    # v7x megacore: guarantee >= 2 grid steps so both TensorCores get work.
    if nb * nhw < 2:
        if B >= 2:
            TB = (B + 1) // 2
            nb = pl.cdiv(B, TB)
        elif HW_pad >= 256:
            THW = max(128, ((HW_pad // 2) // 128) * 128)
            nhw = pl.cdiv(HW_pad, THW)

    # Scoped-VMEM limit: double-buffered tiles + headroom, clamped to physical.
    blk_in = TB * c_in_pad * THW * itemsize
    blk_out = TB * c_out_pad * THW * itemsize
    blk_cm = _round_up(2, sub) * THW * itemsize
    need = 2 * (blk_in + blk_out + blk_cm) + (1 << 20)
    vmem_limit = int(min(max(need, 16 << 20), (vmem_cap * 9) // 10))
    vmem_limit = int(max(vmem_limit, need))  # never starve the chosen blocks

    out2 = pl.pallas_call(
        _coords_kernel,
        out_shape=jax.ShapeDtypeStruct((B, C + 2, HW_pad), dtype),
        grid_spec=pltpu.PrefetchScalarGridSpec(
            num_scalar_prefetch=0,
            grid=(nb, nhw),
            in_specs=[
                # Channel dims equal the full array dims; lane dim is a 128-multiple.
                pl.BlockSpec((TB, C, THW), lambda b, s: (b, 0, s)),
                pl.BlockSpec((2, THW), lambda b, s: (0, s)),
            ],
            out_specs=pl.BlockSpec((TB, C + 2, THW), lambda b, s: (b, 0, s)),
        ),
        compiler_params=pltpu.CompilerParams(
            dimension_semantics=("parallel", "parallel"),
            vmem_limit_bytes=vmem_limit,
        ),
    )(x2, cm)

    out2 = out2[:, :, :HW] if HW_pad != HW else out2
    return out2.reshape(B, C + 2, H, W)


def _reference(x):
    # Pure-JAX reference mirroring the PyTorch forward.
    B, C, H, W = x.shape
    hm = jnp.linspace(0.0, 1.0, H, dtype=x.dtype).reshape(1, 1, H, 1)
    hm = jnp.broadcast_to(hm, (B, 1, H, W))
    wm = jnp.linspace(0.0, 1.0, W, dtype=x.dtype).reshape(1, 1, 1, W)
    wm = jnp.broadcast_to(wm, (B, 1, H, W))
    return jnp.concatenate((x, hm, wm), axis=1)


if __name__ == "__main__":
    key = jax.random.PRNGKey(0)
    B, C, H, W = 2, 4, 16, 16
    x = jax.random.normal(key, (B, C, H, W), dtype=jnp.float32)

    out = coords(x)
    out = jax.block_until_ready(out)

    ref = _reference(x)
    assert out.shape == (B, C + 2, H, W), out.shape
    assert jnp.allclose(out, ref, atol=1e-6), "mismatch vs reference"

    print("KERNEL_OK")
</pallas_src>

<mosaic_0001>
module attributes {stable_mosaic.version = 11 : i64} {
  func.func @_coords_kernel(%arg0: i32, %arg1: i32, %arg2: memref<1x4x256xf32, #tpu.memory_space<vmem>>, %arg3: memref<2x256xf32, #tpu.memory_space<vmem>>, %arg4: memref<1x6x256xf32, #tpu.memory_space<vmem>>) attributes {dimension_semantics = [#tpu.dimension_semantics<parallel>, #tpu.dimension_semantics<parallel>], iteration_bounds = array<i64: 2, 1>, scalar_prefetch = 0 : i64, scratch_operands = 0 : i64, tpu.core_type = #tpu.core_type<tc>, window_params = [{transform_indices = @transform_0, window_bounds = array<i64: 1, 4, 256>}, {transform_indices = @transform_1, window_bounds = array<i64: 2, 256>}, {transform_indices = @transform_2, window_bounds = array<i64: 1, 6, 256>}]} {
    %c0 = arith.constant 0 : index
    %c0_0 = arith.constant 0 : index
    %c0_1 = arith.constant 0 : index
    %0 = vector.load %arg2[%c0, %c0_0, %c0_1] : memref<1x4x256xf32, #tpu.memory_space<vmem>>, vector<1x4x256xf32>
    %c0_2 = arith.constant 0 : index
    %c0_3 = arith.constant 0 : index
    %c0_4 = arith.constant 0 : index
    %1 = vector.load %arg4[%c0_2, %c0_3, %c0_4] : memref<1x6x256xf32, #tpu.memory_space<vmem>>, vector<1x4x256xf32>
    tpu.vector_store %arg4[%c0_2, %c0_3, %c0_4], %0 {strides = array<i32>} : memref<1x6x256xf32, #tpu.memory_space<vmem>>, vector<1x4x256xf32>,
    %c0_5 = arith.constant 0 : index
    %c0_6 = arith.constant 0 : index
    %2 = vector.load %arg3[%c0_5, %c0_6] : memref<2x256xf32, #tpu.memory_space<vmem>>, vector<1x256xf32>
    %c1 = arith.constant 1 : index
    %c0_7 = arith.constant 0 : index
    %3 = vector.load %arg3[%c1, %c0_7] : memref<2x256xf32, #tpu.memory_space<vmem>>, vector<1x256xf32>
    %4 = vector.shape_cast %2 : vector<1x256xf32> to vector<1x1x256xf32>
    %c0_8 = arith.constant 0 : index
    %c4 = arith.constant 4 : index
    %c0_9 = arith.constant 0 : index
    %5 = vector.load %arg4[%c0_8, %c4, %c0_9] : memref<1x6x256xf32, #tpu.memory_space<vmem>>, vector<1x1x256xf32>
    tpu.vector_store %arg4[%c0_8, %c4, %c0_9], %4 {strides = array<i32>} : memref<1x6x256xf32, #tpu.memory_space<vmem>>, vector<1x1x256xf32>,
    %6 = vector.shape_cast %3 : vector<1x256xf32> to vector<1x1x256xf32>
    %c0_10 = arith.constant 0 : index
    %c5 = arith.constant 5 : index
    %c0_11 = arith.constant 0 : index
    %7 = vector.load %arg4[%c0_10, %c5, %c0_11] : memref<1x6x256xf32, #tpu.memory_space<vmem>>, vector<1x1x256xf32>
    tpu.vector_store %arg4[%c0_10, %c5, %c0_11], %6 {strides = array<i32>} : memref<1x6x256xf32, #tpu.memory_space<vmem>>, vector<1x1x256xf32>,
    return
  }
  func.func @transform_0(%arg0: i32, %arg1: i32) -> (i32, i32, i32) {
    %c0_i32 = arith.constant 0 : i32
    %c0_i32_0 = arith.constant 0 : i32
    return %arg0, %c0_i32, %arg1 : i32, i32, i32
  }
  func.func @transform_1(%arg0: i32, %arg1: i32) -> (i32, i32) {
    %c0_i32 = arith.constant 0 : i32
    %c0_i32_0 = arith.constant 0 : i32
    return %c0_i32, %arg1 : i32, i32
  }
  func.func @transform_2(%arg0: i32, %arg1: i32) -> (i32, i32, i32) {
    %c0_i32 = arith.constant 0 : i32
    %c0_i32_0 = arith.constant 0 : i32
    return %arg0, %c0_i32, %arg1 : i32, i32, i32
  }
}

</mosaic_0001>

<llo_original>
// kernel: tpu_custom_call.1
$region0: #{tpu_custom_call.1}
  #allocation0 [shape = 'u32[]', space=smem, size = 0x4, offset = 0x4, fixed_abs, tag = 'smem constant byte address 0x4 - core index']
  #allocation1 [shape = 'u32[144,128]{1,0:T(1,128)}', space=vmem, size = 0x12000, scoped, tag = 'internal scratch']
  %s0 = inlined_call_operand.hbm [shape: f32[2,4,256], index: 0, kind: input, shape index: {}]
  %s1 = inlined_call_operand.hbm [shape: f32[2,256], index: 1, kind: input, shape index: {}]
  %s2 = inlined_call_operand.vmem [shape: f32[2,6,256], index: 2, kind: output, shape index: {}]
  %s3 = sld [smem:[#allocation0]]
  $region49: #{tpu_custom_call.1} parent=0
    _
  %s5 = ssub.s32 1, %s3
  %s6 = scalar_select 0, %s5, %s3
  $region1: #{tpu_custom_call.1} parent=0
    #allocation2 [shape = 'u8[8192]{0}', space=vmem, size = 0x2000, scoped, tag = 'input window, operand 0']
    #allocation3 [shape = 's32[2]{0}', space=sflag, size = 0x8, scoped, tag = 'scoped memory for tpu_custom_call.1']
    #allocation4 [shape = 'u8[2048]{0}', space=vmem, size = 0x800, scoped, tag = 'input window, operand 1, single buffered']
    #allocation5 [shape = 's32[1]{0}', space=sflag, size = 0x4, scoped, tag = 'scoped memory for tpu_custom_call.1']
    %7 = vsyncpa [#allocation3], 0
    %s8 = scalar_lea.sflag [#allocation3], 1
    %9 = vsyncpa %s8, 0
    %10 = vsyncpa [#allocation5], 0
    loop: start=0, step=1, limit=4
    $region2: #{tpu_custom_call.1} parent=1 // loop_pre_header
      _
    $region3: #{tpu_custom_call.1} parent=1 // loop_header
      %s12 = sphi 0, %s16
      %p13 = scmp.ge.s32.totalorder %s12, 4
      %s19 = sphi 0, %s31
      %s20 = sphi 0, %s27
      %s21 = sphi 0, %s19
      %s22 = sphi 0, %s20
      %s23 = sphi 0, %s21
      %s24 = sphi 0, %s22
      %s36 = sphi 0, %s38
      %s39 = sphi 0, %s36
      %s40 = sphi 0, %s39
      %s56 = sphi 0, %s40
      %s62 = sphi 0, %s64
      %s65 = sphi 0, %s62
      %s66 = sphi 0, %s65
      %s82 = sphi 0, %s66
      %s90 = sphi 0, %s92
      %s93 = sphi 0, %s90
      %s94 = sphi 0, %s93
      %s110 = sphi 0, %s94
    $region4: #{tpu_custom_call.1} parent=1 // loop_header_branch
      %15 = sbr.rel (%p13) target = $region8
    $region5: #{tpu_custom_call.1} parent=1 // loop_body
      %s17 = ssub.s32 %s12, 1
      %s18 = ssub.s32 %s12, 2
      %s25 = sadd.s32 1, %s20
      %p26 = scmp.ge.s32.totalorder %s25, 1
      %s27 = scalar_select %p26, 0, %s25
      %s28 = sadd.s32 1, %s19
      %s29 = scalar_select %p26, %s28, %s19
      %p30 = scmp.ge.s32.totalorder %s29, 2
      %s31 = scalar_select %p30, 0, %s29
      %s32 = ssub.s32 %s19, %s31
      %s33 = ssub.s32 %s20, %s27
      %s34 = sor.u32 %s32, %s33
      %p35 = scmp.eq.s32.totalorder %s34, 0
      %s37 = sadd.s32 %s36, 1
      %s38 = scalar_select %p35, %s36, %s37
      %p41 = pneg %p35
      %p42 = scmp.eq.s32.totalorder %s12, 1
      %p43 = por %p41, %p42
      %p44 = scmp.ne.s32.totalorder %s36, %s39
      %p45 = scmp.eq.s32.totalorder %s12, 0
      %p46 = por %p44, %p45
      %p47 = scmp.ne.s32.totalorder %s36, %s39
      %p48 = scmp.eq.s32.totalorder %s17, 1
      %p49 = por %p47, %p48
      %p50 = scmp.ne.s32.totalorder %s39, %s40
      %p51 = scmp.eq.s32.totalorder %s17, 0
      %p52 = por %p50, %p51
      %p53 = scmp.ne.s32.totalorder %s39, %s40
      %p54 = scmp.eq.s32.totalorder %s18, 1
      %p55 = por %p53, %p54
      %p57 = scmp.ne.s32.totalorder %s40, %s56
      %p58 = scmp.eq.s32.totalorder %s18, 0
      %p59 = por %p57, %p58
      %s60 = ssub.s32 %s20, %s27
      %p61 = scmp.eq.s32.totalorder %s60, 0
      %s63 = sadd.s32 %s62, 1
      %s64 = scalar_select %p61, %s62, %s63
      %p67 = pneg %p61
      %p68 = scmp.eq.s32.totalorder %s12, 1
      %p69 = por %p67, %p68
      %p70 = scmp.ne.s32.totalorder %s62, %s65
      %p71 = scmp.eq.s32.totalorder %s12, 0
      %p72 = por %p70, %p71
      %p73 = scmp.ne.s32.totalorder %s62, %s65
      %p74 = scmp.eq.s32.totalorder %s17, 1
      %p75 = por %p73, %p74
      %p76 = scmp.ne.s32.totalorder %s65, %s66
      %p77 = scmp.eq.s32.totalorder %s17, 0
      %p78 = por %p76, %p77
      %p79 = scmp.ne.s32.totalorder %s65, %s66
      %p80 = scmp.eq.s32.totalorder %s18, 1
      %p81 = por %p79, %p80
      %p83 = scmp.ne.s32.totalorder %s66, %s82
      %p84 = scmp.eq.s32.totalorder %s18, 0
      %p85 = por %p83, %p84
      %s86 = ssub.s32 %s19, %s31
      %s87 = ssub.s32 %s20, %s27
      %s88 = sor.u32 %s86, %s87
      %p89 = scmp.eq.s32.totalorder %s88, 0
      %s91 = sadd.s32 %s90, 1
      %s92 = scalar_select %p89, %s90, %s91
      %p95 = pneg %p89
      %p96 = scmp.eq.s32.totalorder %s12, 1
      %p97 = por %p95, %p96
      %p98 = scmp.ne.s32.totalorder %s90, %s93
      %p99 = scmp.eq.s32.totalorder %s12, 0
      %p100 = por %p98, %p99
      %p101 = scmp.ne.s32.totalorder %s90, %s93
      %p102 = scmp.eq.s32.totalorder %s17, 1
      %p103 = por %p101, %p102
      %p104 = scmp.ne.s32.totalorder %s93, %s94
      %p105 = scmp.eq.s32.totalorder %s17, 0
      %p106 = por %p104, %p105
      %p107 = scmp.ne.s32.totalorder %s93, %s94
      %p108 = scmp.eq.s32.totalorder %s18, 1
      %p109 = por %p107, %p108
      %p111 = scmp.ne.s32.totalorder %s94, %s110
      %p112 = scmp.eq.s32.totalorder %s18, 0
      %p113 = por %p111, %p112
      %p114 = scmp.le.s32.totalorder 1, %s12
      %p115 = scmp.lt.s32.totalorder %s12, 3
      %p116 = pnand %p114, %p115
      %p117 = pneg %p116
      // Predicated region
      $region9: #{tpu_custom_call.1} parent=5 // pred_check
        _
      $region10: #{tpu_custom_call.1} parent=5 // pred_check_branch
        %119 = sbr.rel (%p116) target = $region12
      $region11: #{tpu_custom_call.1} parent=5 // pred_region
        %s120 = ssub.s32 %s12, 1
        // Predicated region
        $region13: #{tpu_custom_call.1} parent=11 // pred_check
          %p121 = pneg %p78
        $region14: #{tpu_custom_call.1} parent=11 // pred_check_branch
          %123 = sbr.rel (%p121) target = $region16
        $region15: #{tpu_custom_call.1} parent=11 // pred_region
          %s124 = smul.u32 2, %s22
          %s126 = ssub.s32 64, 64
          %127 = vsyncadd [#allocation5], %s126
          %s128 = smul.addr %s124, 32
          %s129 = scalar_lea.hbm %s1, %s128
          %s131 = sshll.u32 [#allocation4], 4
          %s132 = int_to_ptr.vmem [resolvable:$true] %s131
          %134 = dma.hbm_to_vmem [thread:$0]  %s129, 64, %s132, [#allocation5]
        $region16: #{tpu_custom_call.1} parent=11 // pred_fallthru
          _
      $region12: #{tpu_custom_call.1} parent=5 // pred_fallthru
        _
      %p135 = scmp.lt.s32.totalorder %s12, 2
      // Predicated region
      $region17: #{tpu_custom_call.1} parent=5 // pred_check
        %p136 = pneg %p135
      $region18: #{tpu_custom_call.1} parent=5 // pred_check_branch
        %138 = sbr.rel (%p136) target = $region20
      $region19: #{tpu_custom_call.1} parent=5 // pred_region
        // Predicated region
        $region21: #{tpu_custom_call.1} parent=19 // pred_check
          %p139 = pneg %p46
        $region22: #{tpu_custom_call.1} parent=19 // pred_check_branch
          %141 = sbr.rel (%p139) target = $region24
        $region23: #{tpu_custom_call.1} parent=19 // pred_region
          %s142 = sand.u32 %s36, 1
          %s143 = scalar_lea.sflag [#allocation3], %s142
          %s144 = sand.u32 %s36, 1
          %s145 = smul.addr %s144, 8
          %s146 = scalar_lea.vmem [#allocation2], %s145
          %s147 = smul.u32 2, %s20
          %s149 = ssub.s32 128, 128
          %150 = vsyncadd %s143, %s149
          %s151 = smul.addr %s19, 2
          %s152 = sadd.s32 %s147, %s151
          %s153 = smul.addr %s152, 64
          %s154 = scalar_lea.hbm %s0, %s153
          %s156 = sshll.u32 %s146, 4
          %s157 = int_to_ptr.vmem [resolvable:$true] %s156
          %159 = dma.hbm_to_vmem [thread:$0]  %s154, 128, %s157, %s143
        $region24: #{tpu_custom_call.1} parent=19 // pred_fallthru
          _
      $region20: #{tpu_custom_call.1} parent=5 // pred_fallthru
        _
      %p160 = scmp.le.s32.totalorder 1, %s12
      %p161 = scmp.lt.s32.totalorder %s12, 3
      %p162 = pnand %p160, %p161
      %p163 = pneg %p162
      // Predicated region
      $region25: #{tpu_custom_call.1} parent=5 // pred_check
        _
      $region26: #{tpu_custom_call.1} parent=5 // pred_check_branch
        %165 = sbr.rel (%p162) target = $region28
      $region27: #{tpu_custom_call.1} parent=5 // pred_region
        %s166 = ssub.s32 %s12, 1
        %s167 = sand.u32 %s39, 1
        %s168 = scalar_lea.sflag [#allocation3], %s167
        %s169 = sand.u32 %s39, 1
        %s170 = smul.addr %s169, 8
        %s171 = scalar_lea.vmem [#allocation2], %s170
        // Predicated region
        $region29: #{tpu_custom_call.1} parent=27 // pred_check
          %p172 = pneg %p52
        $region30: #{tpu_custom_call.1} parent=27 // pred_check_branch
          %174 = sbr.rel (%p172) target = $region32
        $region31: #{tpu_custom_call.1} parent=27 // pred_region
          %175 = dma.done %s168, 128
        $region32: #{tpu_custom_call.1} parent=27 // pred_fallthru
          _
        // Predicated region
        $region33: #{tpu_custom_call.1} parent=27 // pred_check
          %p176 = pneg %p78
        $region34: #{tpu_custom_call.1} parent=27 // pred_check_branch
          %178 = sbr.rel (%p176) target = $region36
        $region35: #{tpu_custom_call.1} parent=27 // pred_region
          %179 = dma.done [#allocation5], 64
        $region36: #{tpu_custom_call.1} parent=27 // pred_fallthru
          _
        %s180 = sand.u32 %s39, 1
        %s181 = scalar_lea.sflag [#allocation3], %s180
        %s182 = sand.u32 %s39, 1
        %s183 = smul.addr %s182, 8
        %s184 = scalar_lea.vmem [#allocation2], %s183
        %p185 = pneg %p52
        %p186 = pneg %p49
        %p187 = pneg %p78
        %p188 = pneg %p75
        %p189 = pneg %p106
        %p190 = pneg %p103
        %s191 = smul.u32 2, %s22
        %p192 = scmp.lt.s32.totalorder %s21, 1
        %s193 = scalar_select %p192, %s21, 1
        %p194 = scmp.lt.s32.totalorder %s191, 1
        %s195 = scalar_select %p194, %s191, 1
        %s196 = smul.addr %s193, 2
        %s197 = sadd.s32 %s195, %s196
        %s198 = smul.addr %s197, 8
        %s199 = scalar_lea.vmem %s2, %s198
        %s200 = smul.u32 2, %s22
        %s201 = smul.u32 2, %s22
        %s202 = smul.u32 2, %s22
        %p203 = scmp.lt.s32.totalorder %s21, 1
        %s204 = scalar_select %p203, %s21, 1
        %p205 = scmp.lt.s32.totalorder %s202, 1
        %s206 = scalar_select %p205, %s202, 1
        %s207 = smul.addr %s204, 2
        %s208 = sadd.s32 %s206, %s207
        %s209 = smul.addr %s208, 8
        %s210 = scalar_lea.vmem %s2, %s209
        %s211 = smul.u32 2, %s22
        %v212 = vld [vmem:[%s171] sm:$0xff]
        %v214 = vcombine.high %v212, %v212
        %216 = vst [vmem:[%s210] sm:$0xf] %v212
        %217 = vst [vmem:[%s210 + $0x8] sm:$0xf] %v214
        %v218 = vld [vmem:[#allocation4] ss:$2 sm:$0x3]
        %s219 = scalar_lea.vmem [#allocation4], 1
        %v220 = vld [vmem:[%s219] ss:$2 sm:$0x3]
        %v221 = vlaneseq
        %vm222 = vcmp.ge.s32.totalorder %v221, 0
        %vm223 = vcmp.lt.s32.totalorder %v221, 256
        %vm224 = vmand %vm222, %vm223
        %s225 = scalar_lea.vmem %s210, 4
        %226 = vst.msk [vmem:[%s225] ss:$8 sm:$0x3] %vm224, %v218
        %227 = vst.msk [vmem:[%s225] ss:$8 sm:$0x0] %vm224, %v218
        %s228 = scalar_lea.vmem %s210, 5
        %229 = vst.msk [vmem:[%s228] ss:$8 sm:$0x3] %vm224, %v220
        %230 = vst.msk [vmem:[%s228] ss:$8 sm:$0x0] %vm224, %v220
        %s231 = smul.u32 2, %s22
        %p232 = scmp.lt.s32.totalorder %s21, 1
        %s233 = scalar_select %p232, %s21, 1
        %p234 = scmp.lt.s32.totalorder %s231, 1
        %s235 = scalar_select %p234, %s231, 1
        %s236 = smul.addr %s233, 2
        %s237 = sadd.s32 %s235, %s236
        %s238 = smul.addr %s237, 8
        %s239 = scalar_lea.vmem %s2, %s238
        // Predicated region
        $region37: #{tpu_custom_call.1} parent=27 // pred_check
          %p240 = pneg %p103
        $region38: #{tpu_custom_call.1} parent=27 // pred_check_branch
          %242 = sbr.rel (%p240) target = $region40
        $region39: #{tpu_custom_call.1} parent=27 // pred_region
          %s243 = smul.u32 2, %s22
        $region40: #{tpu_custom_call.1} parent=27 // pred_fallthru
          _
      $region28: #{tpu_custom_call.1} parent=5 // pred_fallthru
        _
      %p244 = scmp.le.s32.totalorder 2, %s12
      // Predicated region
      $region41: #{tpu_custom_call.1} parent=5 // pred_check
        %p245 = pneg %p244
      $region42: #{tpu_custom_call.1} parent=5 // pred_check_branch
        %247 = sbr.rel (%p245) target = $region44
      $region43: #{tpu_custom_call.1} parent=5 // pred_region
        %s248 = ssub.s32 %s12, 2
        // Predicated region
        $region45: #{tpu_custom_call.1} parent=43 // pred_check
          %p249 = pneg %p109
        $region46: #{tpu_custom_call.1} parent=43 // pred_check_branch
          %251 = sbr.rel (%p249) target = $region48
        $region47: #{tpu_custom_call.1} parent=43 // pred_region
          %s252 = smul.u32 2, %s24
          %p253 = scmp.lt.s32.totalorder %s23, 1
          %s254 = scalar_select %p253, %s23, 1
          %p255 = scmp.lt.s32.totalorder %s252, 1
          %s256 = scalar_select %p255, %s252, 1
          %s257 = smul.addr %s254, 2
          %s258 = sadd.s32 %s256, %s257
          %s259 = smul.addr %s258, 8
          %s260 = scalar_lea.vmem %s2, %s259
        $region48: #{tpu_custom_call.1} parent=43 // pred_fallthru
          _
      $region44: #{tpu_custom_call.1} parent=5 // pred_fallthru
        _
    $region6: #{tpu_custom_call.1} parent=1 // loop_footer
      %s16 = sadd.s32 1, %s12
    $region7: #{tpu_custom_call.1} parent=1 // loop_footer_branch
      %11 = sbr.rel target = $region3
    $region8: #{tpu_custom_call.1} parent=1 // loop_exit
      _
    %261 = vsyncpa [#allocation3], 1
    %s262 = scalar_lea.sflag [#allocation3], 1
    %263 = vsyncpa %s262, 1
    %264 = vsyncpa [#allocation5], 1

</llo_original>
